<compile_context>
chip_gen: v7x
topology: tpu7x:2x2x1
jax: 0.10.0
libtpu: 0.0.40
codegen_flags: <defaults>
</compile_context>

<pallas_src>
import functools

import jax
import jax.numpy as jnp
import numpy as np
from jax import lax
from jax.experimental import pallas as pl
from jax.experimental.pallas import tpu as pltpu


def _make_conv_kernel(K, Wp, W, TH):
    """Kernel closure over the static conv geometry of one row tile."""
    Lspan = TH * Wp  # flattened (padded-width) span covering TH output rows

    def kernel(x_ref, w_ref, b_ref, o_ref):
        # x_ref: (1, 1, C_in, Lflat)  bf16 flattened padded row tile (+ K-1 zero tail)
        # w_ref: (C_out, K*K*C_in)    bf16, contraction index = (kh*K + kw)*C_in + c
        # b_ref: (C_out, 1)           f32 bias column
        # o_ref: (1, C_out, TH*W)     f32 compact output rows for this tile
        xf = x_ref[0, 0]                                    # (C_in, Lflat)

        # Stage the K*K taps: each tap is a constant flat shift (static lane
        # slice, XLU work off the MXU path) -> (K*K*C_in, Lspan) operand.
        taps = []
        for kh in range(K):
            for kw in range(K):
                s = kh * Wp + kw
                taps.append(xf[:, s:s + Lspan])             # (C_in, Lspan)
        xcol = jnp.concatenate(taps, axis=0)                # (K*K*C_in, Lspan)

        # ONE MXU matmul with the full K*K*C_in contraction, f32 accumulation.
        acc = jnp.dot(w_ref[...], xcol,
                      preferred_element_type=jnp.float32)   # (C_out, Lspan)
        out = acc + b_ref[...]                              # f32 bias epilogue

        # Compact the width in-kernel: keep only w < W of each padded row
        # (drops the Wp-W wrap columns) -> no post-kernel strided-slice copy.
        for h in range(TH):
            o_ref[0, :, h * W:(h + 1) * W] = out[:, h * Wp:h * Wp + W]

    return kernel


def _pick_tile_h(H, W, C_in, C_out, K, Wp, cd_bytes,
                 budget_bytes=12 * 1024 * 1024):
    """Largest row-tile TH that (a) divides H, (b) yields a lane-dense
    (128-multiple) output block unless TH == H, (c) fits the VMEM budget."""
    def footprint(th):
        thk = th + K - 1
        lflat = thk * Wp + K - 1
        lspan = th * Wp
        in_b = 2 * C_in * lflat * cd_bytes                 # double-buffered input
        out_b = 2 * C_out * th * W * 4                     # double-buffered f32 out
        w_b = 2 * (C_out * K * K * C_in * cd_bytes + C_out * 4)
        tmp_b = K * K * C_in * lspan * cd_bytes + 2 * C_out * lspan * 4
        return in_b + out_b + w_b + tmp_b

    cands = [th for th in range(1, H + 1)
             if H % th == 0 and (th == H or (th * W) % 128 == 0)]
    fitting = [th for th in cands if footprint(th) <= budget_bytes]
    return max(fitting) if fitting else min(cands)


@functools.partial(jax.jit,
                   static_argnames=("kernel_size", "compute_dtype", "tile_h"))
def conv_same_2d(x, weight, bias, kernel_size, compute_dtype=jnp.bfloat16,
                 tile_h=None):
    """ConvSame forward (dims=2).

    x: [N, C_in, H, W] float32, weight: [C_out, C_in, K, K], bias: [C_out].
    Returns [N, C_out, H, W] float32 (NCHW, same as the PyTorch module).
    """
    N, C_in, H, W = x.shape
    C_out = weight.shape[0]
    K = kernel_size
    ka = K // 2
    kb = ka - 1 if K % 2 == 0 else ka
    Hp, Wp = H + K - 1, W + K - 1                 # padded extents

    cd = jnp.dtype(compute_dtype)
    if tile_h is None:
        TH = _pick_tile_h(H, W, C_in, C_out, K, Wp, cd.itemsize)
    else:
        TH = int(tile_h)
        if H % TH != 0 or (TH != H and (TH * W) % 128 != 0):
            raise ValueError("tile_h must divide H and give a 128-multiple row block")
    T = H // TH
    THK = TH + K - 1                              # padded rows per tile (with halo)
    Lflat = THK * Wp + (K - 1)                    # flat tile length (+ tap tail)
    Lspan = TH * Wp

    # --- glue (all in bf16): cast FIRST, reflection pad, halo row tiles, flatten ---
    xc = x.astype(cd)
    xp = jnp.pad(xc, ((0, 0), (0, 0), (ka, kb), (ka, kb)), mode="reflect")
    tiles = [xp[:, :, t * TH: t * TH + THK, :] for t in range(T)]  # halo duplication
    xt = jnp.stack(tiles, axis=1)                                  # (N, T, C_in, THK, Wp)
    xflat = xt.reshape(N, T, C_in, THK * Wp)
    xflat = jnp.pad(xflat, ((0, 0), (0, 0), (0, 0), (0, K - 1)))   # K-1 zero tail

    # Weight as one (C_out, K*K*C_in) matrix; contraction index (kh, kw, c).
    w_mat = jnp.transpose(weight, (0, 2, 3, 1)).reshape(C_out, K * K * C_in)
    w_mat = w_mat.astype(cd)
    b_col = bias.reshape(C_out, 1).astype(jnp.float32)

    kernel = _make_conv_kernel(K, Wp, W, TH)

    flops = 2 * N * T * C_out * (K * K * C_in) * Lspan
    bytes_accessed = (xflat.size * xflat.dtype.itemsize
                      + w_mat.size * w_mat.dtype.itemsize + C_out * 4
                      + N * C_out * H * W * 4)

    out_flat = pl.pallas_call(
        kernel,
        out_shape=jax.ShapeDtypeStruct((N, C_out, H * W), jnp.float32),
        grid_spec=pltpu.PrefetchScalarGridSpec(
            num_scalar_prefetch=0,
            grid=(N, T),                                       # batch x row tiles
            in_specs=[
                pl.BlockSpec((1, 1, C_in, Lflat), lambda n, t: (n, t, 0, 0)),
                pl.BlockSpec((C_out, K * K * C_in), lambda n, t: (0, 0)),
                pl.BlockSpec((C_out, 1), lambda n, t: (0, 0)),
            ],
            # (C_out, TH*W) columns of the compact (C_out, H*W) output plane.
            out_specs=pl.BlockSpec((1, C_out, TH * W), lambda n, t: (n, 0, t)),
        ),
        compiler_params=pltpu.CompilerParams(
            dimension_semantics=("parallel", "parallel"),
            vmem_limit_bytes=32 * 1024 * 1024),
        cost_estimate=pl.CostEstimate(
            flops=flops, transcendentals=0, bytes_accessed=bytes_accessed),
    )(xflat, w_mat, b_col)

    # Pure reshape (contiguous split), no transpose / no strided slice copy.
    return out_flat.reshape(N, C_out, H, W)


def _reference_conv_same(x, weight, bias, kernel_size):
    """Pure-JAX reference: reflection pad + VALID cross-correlation + bias."""
    K = kernel_size
    ka = K // 2
    kb = ka - 1 if K % 2 == 0 else ka
    xp = jnp.pad(x, ((0, 0), (0, 0), (ka, kb), (ka, kb)), mode="reflect")
    y = lax.conv_general_dilated(
        xp, weight, window_strides=(1, 1), padding="VALID",
        dimension_numbers=("NCHW", "OIHW", "NCHW"),
        precision=lax.Precision.HIGHEST)
    return y + bias.reshape(1, -1, 1, 1)


if __name__ == "__main__":
    key = jax.random.PRNGKey(0)
    configs = [
        # (N, C_in, H,  W,  C_out, K, tile_h)
        (2, 4, 16, 16, 8, 3, None),   # ConvSame(4, 8, 3, dims=2), auto tile (T=1)
        (2, 4, 16, 16, 8, 3, 8),      # forced TH=8 -> T=2: exercises halo row tiling
        (1, 3, 12, 20, 6, 4, None),   # even kernel_size, ragged channel/width sizes
    ]
    for (N, C_in, H, W, C_out, K, th) in configs:
        key, kx, kw_, kb_ = jax.random.split(key, 4)
        x = jax.random.normal(kx, (N, C_in, H, W), dtype=jnp.float32)
        # deterministic parameter init (kaiming-uniform-like bound, synthetic)
        fan_in = C_in * K * K
        bound = 1.0 / np.sqrt(fan_in)
        weight = jax.random.uniform(kw_, (C_out, C_in, K, K), jnp.float32,
                                    -bound, bound)
        bias = jax.random.uniform(kb_, (C_out,), jnp.float32, -bound, bound)

        y = conv_same_2d(x, weight, bias, kernel_size=K, tile_h=th)
        y = jax.block_until_ready(y)
        assert y.shape == (N, C_out, H, W)

        # Reference computed on the same bf16-rounded operands the kernel feeds
        # the MXU (both accumulate in f32), isolating kernel correctness from
        # the intentional bf16 input quantization.
        x_q = x.astype(jnp.bfloat16).astype(jnp.float32)
        w_q = weight.astype(jnp.bfloat16).astype(jnp.float32)
        y_ref = _reference_conv_same(x_q, w_q, bias, K)
        np.testing.assert_allclose(np.asarray(y), np.asarray(y_ref),
                                   rtol=1e-3, atol=1e-3)

    print("KERNEL_OK")
</pallas_src>

<mosaic_0001>
module attributes {stable_mosaic.version = 11 : i64} {
  func.func @kernel(%arg0: i32, %arg1: i32, %arg2: memref<1x1x4x326xbf16, #tpu.memory_space<vmem>>, %arg3: memref<8x36xbf16, #tpu.memory_space<vmem>>, %arg4: memref<8x1xf32, #tpu.memory_space<vmem>>, %arg5: memref<1x8x256xf32, #tpu.memory_space<vmem>>) attributes {dimension_semantics = [#tpu.dimension_semantics<parallel>, #tpu.dimension_semantics<parallel>], iteration_bounds = array<i64: 2, 1>, scalar_prefetch = 0 : i64, scratch_operands = 0 : i64, tpu.core_type = #tpu.core_type<tc>, window_params = [{transform_indices = @transform_0, window_bounds = array<i64: 1, 1, 4, 326>}, {pipeline_mode = #tpu.pipeline_mode<synchronous>, transform_indices = @transform_1, window_bounds = array<i64: 8, 36>}, {pipeline_mode = #tpu.pipeline_mode<synchronous>, transform_indices = @transform_2, window_bounds = array<i64: 8, 1>}, {transform_indices = @transform_3, window_bounds = array<i64: 1, 8, 256>}]} {
    %c0 = arith.constant 0 : index
    %c0_0 = arith.constant 0 : index
    %c0_1 = arith.constant 0 : index
    %c0_2 = arith.constant 0 : index
    %0 = vector.load %arg2[%c0, %c0_0, %c0_1, %c0_2] : memref<1x1x4x326xbf16, #tpu.memory_space<vmem>>, vector<1x1x4x326xbf16>
    %1 = vector.shape_cast %0 : vector<1x1x4x326xbf16> to vector<4x326xbf16>
    %2 = vector.extract_strided_slice %1 {offsets = [0, 0], sizes = [4, 288], strides = [1, 1]} : vector<4x326xbf16> to vector<4x288xbf16>
    %3 = vector.extract_strided_slice %1 {offsets = [0, 1], sizes = [4, 288], strides = [1, 1]} : vector<4x326xbf16> to vector<4x288xbf16>
    %4 = vector.extract_strided_slice %1 {offsets = [0, 2], sizes = [4, 288], strides = [1, 1]} : vector<4x326xbf16> to vector<4x288xbf16>
    %5 = vector.extract_strided_slice %1 {offsets = [0, 18], sizes = [4, 288], strides = [1, 1]} : vector<4x326xbf16> to vector<4x288xbf16>
    %6 = vector.extract_strided_slice %1 {offsets = [0, 19], sizes = [4, 288], strides = [1, 1]} : vector<4x326xbf16> to vector<4x288xbf16>
    %7 = vector.extract_strided_slice %1 {offsets = [0, 20], sizes = [4, 288], strides = [1, 1]} : vector<4x326xbf16> to vector<4x288xbf16>
    %8 = vector.extract_strided_slice %1 {offsets = [0, 36], sizes = [4, 288], strides = [1, 1]} : vector<4x326xbf16> to vector<4x288xbf16>
    %9 = vector.extract_strided_slice %1 {offsets = [0, 37], sizes = [4, 288], strides = [1, 1]} : vector<4x326xbf16> to vector<4x288xbf16>
    %10 = vector.extract_strided_slice %1 {offsets = [0, 38], sizes = [4, 288], strides = [1, 1]} : vector<4x326xbf16> to vector<4x288xbf16>
    %11 = tpu.concatenate %2, %3, %4, %5, %6, %7, %8, %9, %10 in 0 : vector<4x288xbf16>, vector<4x288xbf16>, vector<4x288xbf16>, vector<4x288xbf16>, vector<4x288xbf16>, vector<4x288xbf16>, vector<4x288xbf16>, vector<4x288xbf16>, vector<4x288xbf16> -> vector<36x288xbf16>
    %c0_3 = arith.constant 0 : index
    %c0_4 = arith.constant 0 : index
    %12 = vector.load %arg3[%c0_3, %c0_4] : memref<8x36xbf16, #tpu.memory_space<vmem>>, vector<8x36xbf16>
    %cst = arith.constant dense<0.000000e+00> : vector<8x288xf32>
    %13 = tpu.matmul %12, %11, %cst {dimension_numbers = #tpu.dot_dimension_numbers<[1], [0], [0], [1], [0, 0, 1, 1], [], []>} : vector<8x36xbf16>, vector<36x288xbf16>, vector<8x288xf32> -> vector<8x288xf32>
    %c0_5 = arith.constant 0 : index
    %c0_6 = arith.constant 0 : index
    %14 = vector.load %arg4[%c0_5, %c0_6] : memref<8x1xf32, #tpu.memory_space<vmem>>, vector<8x1xf32>
    %15 = vector.broadcast %14 : vector<8x1xf32> to vector<8x288xf32>
    %16 = arith.addf %13, %15 : vector<8x288xf32>
    %17 = vector.extract_strided_slice %16 {offsets = [0, 0], sizes = [8, 16], strides = [1, 1]} : vector<8x288xf32> to vector<8x16xf32>
    %c0_7 = arith.constant 0 : index
    %c0_8 = arith.constant 0 : index
    %c0_9 = arith.constant 0 : index
    %18 = vector.load %arg5[%c0_7, %c0_8, %c0_9] : memref<1x8x256xf32, #tpu.memory_space<vmem>>, vector<1x8x16xf32>
    %19 = vector.shape_cast %18 : vector<1x8x16xf32> to vector<8x16xf32>
    %20 = vector.shape_cast %17 : vector<8x16xf32> to vector<1x8x16xf32>
    tpu.vector_store %arg5[%c0_7, %c0_8, %c0_9], %20 {strides = array<i32>} : memref<1x8x256xf32, #tpu.memory_space<vmem>>, vector<1x8x16xf32>,
    %21 = vector.extract_strided_slice %16 {offsets = [0, 18], sizes = [8, 16], strides = [1, 1]} : vector<8x288xf32> to vector<8x16xf32>
    %c0_10 = arith.constant 0 : index
    %c0_11 = arith.constant 0 : index
    %c16 = arith.constant 16 : index
    %22 = vector.load %arg5[%c0_10, %c0_11, %c16] : memref<1x8x256xf32, #tpu.memory_space<vmem>>, vector<1x8x16xf32>
    %23 = vector.shape_cast %22 : vector<1x8x16xf32> to vector<8x16xf32>
    %24 = vector.shape_cast %21 : vector<8x16xf32> to vector<1x8x16xf32>
    tpu.vector_store %arg5[%c0_10, %c0_11, %c16], %24 {strides = array<i32>} : memref<1x8x256xf32, #tpu.memory_space<vmem>>, vector<1x8x16xf32>,
    %25 = vector.extract_strided_slice %16 {offsets = [0, 36], sizes = [8, 16], strides = [1, 1]} : vector<8x288xf32> to vector<8x16xf32>
    %c0_12 = arith.constant 0 : index
    %c0_13 = arith.constant 0 : index
    %c32 = arith.constant 32 : index
    %26 = vector.load %arg5[%c0_12, %c0_13, %c32] : memref<1x8x256xf32, #tpu.memory_space<vmem>>, vector<1x8x16xf32>
    %27 = vector.shape_cast %26 : vector<1x8x16xf32> to vector<8x16xf32>
    %28 = vector.shape_cast %25 : vector<8x16xf32> to vector<1x8x16xf32>
    tpu.vector_store %arg5[%c0_12, %c0_13, %c32], %28 {strides = array<i32>} : memref<1x8x256xf32, #tpu.memory_space<vmem>>, vector<1x8x16xf32>,
    %29 = vector.extract_strided_slice %16 {offsets = [0, 54], sizes = [8, 16], strides = [1, 1]} : vector<8x288xf32> to vector<8x16xf32>
    %c0_14 = arith.constant 0 : index
    %c0_15 = arith.constant 0 : index
    %c48 = arith.constant 48 : index
    %30 = vector.load %arg5[%c0_14, %c0_15, %c48] : memref<1x8x256xf32, #tpu.memory_space<vmem>>, vector<1x8x16xf32>
    %31 = vector.shape_cast %30 : vector<1x8x16xf32> to vector<8x16xf32>
    %32 = vector.shape_cast %29 : vector<8x16xf32> to vector<1x8x16xf32>
    tpu.vector_store %arg5[%c0_14, %c0_15, %c48], %32 {strides = array<i32>} : memref<1x8x256xf32, #tpu.memory_space<vmem>>, vector<1x8x16xf32>,
    %33 = vector.extract_strided_slice %16 {offsets = [0, 72], sizes = [8, 16], strides = [1, 1]} : vector<8x288xf32> to vector<8x16xf32>
    %c0_16 = arith.constant 0 : index
    %c0_17 = arith.constant 0 : index
    %c64 = arith.constant 64 : index
    %34 = vector.load %arg5[%c0_16, %c0_17, %c64] : memref<1x8x256xf32, #tpu.memory_space<vmem>>, vector<1x8x16xf32>
    %35 = vector.shape_cast %34 : vector<1x8x16xf32> to vector<8x16xf32>
    %36 = vector.shape_cast %33 : vector<8x16xf32> to vector<1x8x16xf32>
    tpu.vector_store %arg5[%c0_16, %c0_17, %c64], %36 {strides = array<i32>} : memref<1x8x256xf32, #tpu.memory_space<vmem>>, vector<1x8x16xf32>,
    %37 = vector.extract_strided_slice %16 {offsets = [0, 90], sizes = [8, 16], strides = [1, 1]} : vector<8x288xf32> to vector<8x16xf32>
    %c0_18 = arith.constant 0 : index
    %c0_19 = arith.constant 0 : index
    %c80 = arith.constant 80 : index
    %38 = vector.load %arg5[%c0_18, %c0_19, %c80] : memref<1x8x256xf32, #tpu.memory_space<vmem>>, vector<1x8x16xf32>
    %39 = vector.shape_cast %38 : vector<1x8x16xf32> to vector<8x16xf32>
    %40 = vector.shape_cast %37 : vector<8x16xf32> to vector<1x8x16xf32>
    tpu.vector_store %arg5[%c0_18, %c0_19, %c80], %40 {strides = array<i32>} : memref<1x8x256xf32, #tpu.memory_space<vmem>>, vector<1x8x16xf32>,
    %41 = vector.extract_strided_slice %16 {offsets = [0, 108], sizes = [8, 16], strides = [1, 1]} : vector<8x288xf32> to vector<8x16xf32>
    %c0_20 = arith.constant 0 : index
    %c0_21 = arith.constant 0 : index
    %c96 = arith.constant 96 : index
    %42 = vector.load %arg5[%c0_20, %c0_21, %c96] : memref<1x8x256xf32, #tpu.memory_space<vmem>>, vector<1x8x16xf32>
    %43 = vector.shape_cast %42 : vector<1x8x16xf32> to vector<8x16xf32>
    %44 = vector.shape_cast %41 : vector<8x16xf32> to vector<1x8x16xf32>
    tpu.vector_store %arg5[%c0_20, %c0_21, %c96], %44 {strides = array<i32>} : memref<1x8x256xf32, #tpu.memory_space<vmem>>, vector<1x8x16xf32>,
    %45 = vector.extract_strided_slice %16 {offsets = [0, 126], sizes = [8, 16], strides = [1, 1]} : vector<8x288xf32> to vector<8x16xf32>
    %c0_22 = arith.constant 0 : index
    %c0_23 = arith.constant 0 : index
    %c112 = arith.constant 112 : index
    %46 = vector.load %arg5[%c0_22, %c0_23, %c112] : memref<1x8x256xf32, #tpu.memory_space<vmem>>, vector<1x8x16xf32>
    %47 = vector.shape_cast %46 : vector<1x8x16xf32> to vector<8x16xf32>
    %48 = vector.shape_cast %45 : vector<8x16xf32> to vector<1x8x16xf32>
    tpu.vector_store %arg5[%c0_22, %c0_23, %c112], %48 {strides = array<i32>} : memref<1x8x256xf32, #tpu.memory_space<vmem>>, vector<1x8x16xf32>,
    %49 = vector.extract_strided_slice %16 {offsets = [0, 144], sizes = [8, 16], strides = [1, 1]} : vector<8x288xf32> to vector<8x16xf32>
    %c0_24 = arith.constant 0 : index
    %c0_25 = arith.constant 0 : index
    %c128 = arith.constant 128 : index
    %50 = vector.load %arg5[%c0_24, %c0_25, %c128] : memref<1x8x256xf32, #tpu.memory_space<vmem>>, vector<1x8x16xf32>
    %51 = vector.shape_cast %50 : vector<1x8x16xf32> to vector<8x16xf32>
    %52 = vector.shape_cast %49 : vector<8x16xf32> to vector<1x8x16xf32>
    tpu.vector_store %arg5[%c0_24, %c0_25, %c128], %52 {strides = array<i32>} : memref<1x8x256xf32, #tpu.memory_space<vmem>>, vector<1x8x16xf32>,
    %53 = vector.extract_strided_slice %16 {offsets = [0, 162], sizes = [8, 16], strides = [1, 1]} : vector<8x288xf32> to vector<8x16xf32>
    %c0_26 = arith.constant 0 : index
    %c0_27 = arith.constant 0 : index
    %c144 = arith.constant 144 : index
    %54 = vector.load %arg5[%c0_26, %c0_27, %c144] : memref<1x8x256xf32, #tpu.memory_space<vmem>>, vector<1x8x16xf32>
    %55 = vector.shape_cast %54 : vector<1x8x16xf32> to vector<8x16xf32>
    %56 = vector.shape_cast %53 : vector<8x16xf32> to vector<1x8x16xf32>
    tpu.vector_store %arg5[%c0_26, %c0_27, %c144], %56 {strides = array<i32>} : memref<1x8x256xf32, #tpu.memory_space<vmem>>, vector<1x8x16xf32>,
    %57 = vector.extract_strided_slice %16 {offsets = [0, 180], sizes = [8, 16], strides = [1, 1]} : vector<8x288xf32> to vector<8x16xf32>
    %c0_28 = arith.constant 0 : index
    %c0_29 = arith.constant 0 : index
    %c160 = arith.constant 160 : index
    %58 = vector.load %arg5[%c0_28, %c0_29, %c160] : memref<1x8x256xf32, #tpu.memory_space<vmem>>, vector<1x8x16xf32>
    %59 = vector.shape_cast %58 : vector<1x8x16xf32> to vector<8x16xf32>
    %60 = vector.shape_cast %57 : vector<8x16xf32> to vector<1x8x16xf32>
    tpu.vector_store %arg5[%c0_28, %c0_29, %c160], %60 {strides = array<i32>} : memref<1x8x256xf32, #tpu.memory_space<vmem>>, vector<1x8x16xf32>,
    %61 = vector.extract_strided_slice %16 {offsets = [0, 198], sizes = [8, 16], strides = [1, 1]} : vector<8x288xf32> to vector<8x16xf32>
    %c0_30 = arith.constant 0 : index
    %c0_31 = arith.constant 0 : index
    %c176 = arith.constant 176 : index
    %62 = vector.load %arg5[%c0_30, %c0_31, %c176] : memref<1x8x256xf32, #tpu.memory_space<vmem>>, vector<1x8x16xf32>
    %63 = vector.shape_cast %62 : vector<1x8x16xf32> to vector<8x16xf32>
    %64 = vector.shape_cast %61 : vector<8x16xf32> to vector<1x8x16xf32>
    tpu.vector_store %arg5[%c0_30, %c0_31, %c176], %64 {strides = array<i32>} : memref<1x8x256xf32, #tpu.memory_space<vmem>>, vector<1x8x16xf32>,
    %65 = vector.extract_strided_slice %16 {offsets = [0, 216], sizes = [8, 16], strides = [1, 1]} : vector<8x288xf32> to vector<8x16xf32>
    %c0_32 = arith.constant 0 : index
    %c0_33 = arith.constant 0 : index
    %c192 = arith.constant 192 : index
    %66 = vector.load %arg5[%c0_32, %c0_33, %c192] : memref<1x8x256xf32, #tpu.memory_space<vmem>>, vector<1x8x16xf32>
    %67 = vector.shape_cast %66 : vector<1x8x16xf32> to vector<8x16xf32>
    %68 = vector.shape_cast %65 : vector<8x16xf32> to vector<1x8x16xf32>
    tpu.vector_store %arg5[%c0_32, %c0_33, %c192], %68 {strides = array<i32>} : memref<1x8x256xf32, #tpu.memory_space<vmem>>, vector<1x8x16xf32>,
    %69 = vector.extract_strided_slice %16 {offsets = [0, 234], sizes = [8, 16], strides = [1, 1]} : vector<8x288xf32> to vector<8x16xf32>
    %c0_34 = arith.constant 0 : index
    %c0_35 = arith.constant 0 : index
    %c208 = arith.constant 208 : index
    %70 = vector.load %arg5[%c0_34, %c0_35, %c208] : memref<1x8x256xf32, #tpu.memory_space<vmem>>, vector<1x8x16xf32>
    %71 = vector.shape_cast %70 : vector<1x8x16xf32> to vector<8x16xf32>
    %72 = vector.shape_cast %69 : vector<8x16xf32> to vector<1x8x16xf32>
    tpu.vector_store %arg5[%c0_34, %c0_35, %c208], %72 {strides = array<i32>} : memref<1x8x256xf32, #tpu.memory_space<vmem>>, vector<1x8x16xf32>,
    %73 = vector.extract_strided_slice %16 {offsets = [0, 252], sizes = [8, 16], strides = [1, 1]} : vector<8x288xf32> to vector<8x16xf32>
    %c0_36 = arith.constant 0 : index
    %c0_37 = arith.constant 0 : index
    %c224 = arith.constant 224 : index
    %74 = vector.load %arg5[%c0_36, %c0_37, %c224] : memref<1x8x256xf32, #tpu.memory_space<vmem>>, vector<1x8x16xf32>
    %75 = vector.shape_cast %74 : vector<1x8x16xf32> to vector<8x16xf32>
    %76 = vector.shape_cast %73 : vector<8x16xf32> to vector<1x8x16xf32>
    tpu.vector_store %arg5[%c0_36, %c0_37, %c224], %76 {strides = array<i32>} : memref<1x8x256xf32, #tpu.memory_space<vmem>>, vector<1x8x16xf32>,
    %77 = vector.extract_strided_slice %16 {offsets = [0, 270], sizes = [8, 16], strides = [1, 1]} : vector<8x288xf32> to vector<8x16xf32>
    %c0_38 = arith.constant 0 : index
    %c0_39 = arith.constant 0 : index
    %c240 = arith.constant 240 : index
    %78 = vector.load %arg5[%c0_38, %c0_39, %c240] : memref<1x8x256xf32, #tpu.memory_space<vmem>>, vector<1x8x16xf32>
    %79 = vector.shape_cast %78 : vector<1x8x16xf32> to vector<8x16xf32>
    %80 = vector.shape_cast %77 : vector<8x16xf32> to vector<1x8x16xf32>
    tpu.vector_store %arg5[%c0_38, %c0_39, %c240], %80 {strides = array<i32>} : memref<1x8x256xf32, #tpu.memory_space<vmem>>, vector<1x8x16xf32>,
    return
  }
  func.func @transform_0(%arg0: i32, %arg1: i32) -> (i32, i32, i32, i32) {
    %c0_i32 = arith.constant 0 : i32
    %c0_i32_0 = arith.constant 0 : i32
    %c0_i32_1 = arith.constant 0 : i32
    return %arg0, %arg1, %c0_i32, %c0_i32_0 : i32, i32, i32, i32
  }
  func.func @transform_1(%arg0: i32, %arg1: i32) -> (i32, i32) {
    %c0_i32 = arith.constant 0 : i32
    %c0_i32_0 = arith.constant 0 : i32
    %c0_i32_1 = arith.constant 0 : i32
    return %c0_i32, %c0_i32_0 : i32, i32
  }
  func.func @transform_2(%arg0: i32, %arg1: i32) -> (i32, i32) {
    %c0_i32 = arith.constant 0 : i32
    %c0_i32_0 = arith.constant 0 : i32
    %c0_i32_1 = arith.constant 0 : i32
    return %c0_i32, %c0_i32_0 : i32, i32
  }
  func.func @transform_3(%arg0: i32, %arg1: i32) -> (i32, i32, i32) {
    %c0_i32 = arith.constant 0 : i32
    %c0_i32_0 = arith.constant 0 : i32
    return %arg0, %c0_i32, %arg1 : i32, i32, i32
  }
}

</mosaic_0001>

<llo_original>
// kernel: conv_same_2d.1
$region0: #{conv_same_2d.1}
  #allocation0 [shape = 'u32[]', space=smem, size = 0x4, offset = 0x4, fixed_abs, tag = 'smem constant byte address 0x4 - core index']
  #allocation1 [shape = 'u32[144,128]{1,0:T(1,128)}', space=vmem, size = 0x12000, scoped, tag = 'internal scratch']
  %s0 = inlined_call_operand.vmem [shape: bf16[2,1,4,326], index: 0, kind: input, shape index: {}]
  %s1 = inlined_call_operand.vmem [shape: bf16[8,36], index: 1, kind: input, shape index: {}]
  %s2 = inlined_call_operand.vmem [shape: f32[8,1], index: 2, kind: input, shape index: {}]
  %s3 = inlined_call_operand.vmem [shape: f32[2,8,256], index: 3, kind: output, shape index: {}]
  %s4 = sld [smem:[#allocation0]]
  $region45: #{conv_same_2d.1} parent=0
    _
  %s6 = ssub.s32 1, %s4
  %s7 = scalar_select 0, %s6, %s4
  loop: start=0, step=1, limit=4
  $region2: #{conv_same_2d.1} parent=0 // loop_pre_header
    _
  $region3: #{conv_same_2d.1} parent=0 // loop_header
    %s9 = sphi 0, %s13
    %p10 = scmp.ge.s32.totalorder %s9, 4
    %s16 = sphi 0, %s28
    %s17 = sphi 0, %s24
    %s18 = sphi 0, %s16
    %s19 = sphi 0, %s17
    %s20 = sphi 0, %s18
    %s21 = sphi 0, %s19
    %s33 = sphi 0, %s35
    %s36 = sphi 0, %s33
    %s37 = sphi 0, %s36
    %s53 = sphi 0, %s37
    %s57 = sphi 0, %s57
    %s59 = sphi 0, %s57
    %s60 = sphi 0, %s59
    %s74 = sphi 0, %s60
    %s78 = sphi 0, %s78
    %s80 = sphi 0, %s78
    %s81 = sphi 0, %s80
    %s95 = sphi 0, %s81
    %s103 = sphi 0, %s105
    %s106 = sphi 0, %s103
    %s107 = sphi 0, %s106
    %s123 = sphi 0, %s107
  $region4: #{conv_same_2d.1} parent=0 // loop_header_branch
    %12 = sbr.rel (%p10) target = $region8
  $region5: #{conv_same_2d.1} parent=0 // loop_body
    %s14 = ssub.s32 %s9, 1
    %s15 = ssub.s32 %s9, 2
    %s22 = sadd.s32 1, %s17
    %p23 = scmp.ge.s32.totalorder %s22, 1
    %s24 = scalar_select %p23, 0, %s22
    %s25 = sadd.s32 1, %s16
    %s26 = scalar_select %p23, %s25, %s16
    %p27 = scmp.ge.s32.totalorder %s26, 2
    %s28 = scalar_select %p27, 0, %s26
    %s29 = ssub.s32 %s16, %s28
    %s30 = ssub.s32 %s17, %s24
    %s31 = sor.u32 %s29, %s30
    %p32 = scmp.eq.s32.totalorder %s31, 0
    %s34 = sadd.s32 %s33, 1
    %s35 = scalar_select %p32, %s33, %s34
    %p38 = pneg %p32
    %p39 = scmp.eq.s32.totalorder %s9, 1
    %p40 = por %p38, %p39
    %p41 = scmp.ne.s32.totalorder %s33, %s36
    %p42 = scmp.eq.s32.totalorder %s9, 0
    %p43 = por %p41, %p42
    %p44 = scmp.ne.s32.totalorder %s33, %s36
    %p45 = scmp.eq.s32.totalorder %s14, 1
    %p46 = por %p44, %p45
    %p47 = scmp.ne.s32.totalorder %s36, %s37
    %p48 = scmp.eq.s32.totalorder %s14, 0
    %p49 = por %p47, %p48
    %p50 = scmp.ne.s32.totalorder %s36, %s37
    %p51 = scmp.eq.s32.totalorder %s15, 1
    %p52 = por %p50, %p51
    %p54 = scmp.ne.s32.totalorder %s37, %s53
    %p55 = scmp.eq.s32.totalorder %s15, 0
    %p56 = por %p54, %p55
    %s58 = sadd.s32 %s57, 1
    %p61 = scmp.eq.s32.totalorder %s9, 1
    %p62 = scmp.ne.s32.totalorder %s57, %s59
    %p63 = scmp.eq.s32.totalorder %s9, 0
    %p64 = por %p62, %p63
    %p65 = scmp.ne.s32.totalorder %s57, %s59
    %p66 = scmp.eq.s32.totalorder %s14, 1
    %p67 = por %p65, %p66
    %p68 = scmp.ne.s32.totalorder %s59, %s60
    %p69 = scmp.eq.s32.totalorder %s14, 0
    %p70 = por %p68, %p69
    %p71 = scmp.ne.s32.totalorder %s59, %s60
    %p72 = scmp.eq.s32.totalorder %s15, 1
    %p73 = por %p71, %p72
    %p75 = scmp.ne.s32.totalorder %s60, %s74
    %p76 = scmp.eq.s32.totalorder %s15, 0
    %p77 = por %p75, %p76
    %s79 = sadd.s32 %s78, 1
    %p82 = scmp.eq.s32.totalorder %s9, 1
    %p83 = scmp.ne.s32.totalorder %s78, %s80
    %p84 = scmp.eq.s32.totalorder %s9, 0
    %p85 = por %p83, %p84
    %p86 = scmp.ne.s32.totalorder %s78, %s80
    %p87 = scmp.eq.s32.totalorder %s14, 1
    %p88 = por %p86, %p87
    %p89 = scmp.ne.s32.totalorder %s80, %s81
    %p90 = scmp.eq.s32.totalorder %s14, 0
    %p91 = por %p89, %p90
    %p92 = scmp.ne.s32.totalorder %s80, %s81
    %p93 = scmp.eq.s32.totalorder %s15, 1
    %p94 = por %p92, %p93
    %p96 = scmp.ne.s32.totalorder %s81, %s95
    %p97 = scmp.eq.s32.totalorder %s15, 0
    %p98 = por %p96, %p97
    %s99 = ssub.s32 %s16, %s28
    %s100 = ssub.s32 %s17, %s24
    %s101 = sor.u32 %s99, %s100
    %p102 = scmp.eq.s32.totalorder %s101, 0
    %s104 = sadd.s32 %s103, 1
    %s105 = scalar_select %p102, %s103, %s104
    %p108 = pneg %p102
    %p109 = scmp.eq.s32.totalorder %s9, 1
    %p110 = por %p108, %p109
    %p111 = scmp.ne.s32.totalorder %s103, %s106
    %p112 = scmp.eq.s32.totalorder %s9, 0
    %p113 = por %p111, %p112
    %p114 = scmp.ne.s32.totalorder %s103, %s106
    %p115 = scmp.eq.s32.totalorder %s14, 1
    %p116 = por %p114, %p115
    %p117 = scmp.ne.s32.totalorder %s106, %s107
    %p118 = scmp.eq.s32.totalorder %s14, 0
    %p119 = por %p117, %p118
    %p120 = scmp.ne.s32.totalorder %s106, %s107
    %p121 = scmp.eq.s32.totalorder %s15, 1
    %p122 = por %p120, %p121
    %p124 = scmp.ne.s32.totalorder %s107, %s123
    %p125 = scmp.eq.s32.totalorder %s15, 0
    %p126 = por %p124, %p125
    %p127 = scmp.le.s32.totalorder 1, %s9
    %p128 = scmp.lt.s32.totalorder %s9, 3
    %p129 = pnand %p127, %p128
    %p130 = pneg %p129
    // Predicated region
    $region9: #{conv_same_2d.1} parent=5 // pred_check
      _
    $region10: #{conv_same_2d.1} parent=5 // pred_check_branch
      %132 = sbr.rel (%p129) target = $region12
    $region11: #{conv_same_2d.1} parent=5 // pred_region
      %s133 = ssub.s32 %s9, 1
      // Predicated region
      $region13: #{conv_same_2d.1} parent=11 // pred_check
        %p134 = pneg %p70
      $region14: #{conv_same_2d.1} parent=11 // pred_check_branch
        %136 = sbr.rel (%p134) target = $region16
      $region15: #{conv_same_2d.1} parent=11 // pred_region
        _
      $region16: #{conv_same_2d.1} parent=11 // pred_fallthru
        _
      // Predicated region
      $region17: #{conv_same_2d.1} parent=11 // pred_check
        %p137 = pneg %p91
      $region18: #{conv_same_2d.1} parent=11 // pred_check_branch
        %139 = sbr.rel (%p137) target = $region20
      $region19: #{conv_same_2d.1} parent=11 // pred_region
        _
      $region20: #{conv_same_2d.1} parent=11 // pred_fallthru
        _
    $region12: #{conv_same_2d.1} parent=5 // pred_fallthru
      _
    %p140 = scmp.lt.s32.totalorder %s9, 2
    // Predicated region
    $region21: #{conv_same_2d.1} parent=5 // pred_check
      %p141 = pneg %p140
    $region22: #{conv_same_2d.1} parent=5 // pred_check_branch
      %143 = sbr.rel (%p141) target = $region24
    $region23: #{conv_same_2d.1} parent=5 // pred_region
      // Predicated region
      $region25: #{conv_same_2d.1} parent=23 // pred_check
        %p144 = pneg %p43
      $region26: #{conv_same_2d.1} parent=23 // pred_check_branch
        %146 = sbr.rel (%p144) target = $region28
      $region27: #{conv_same_2d.1} parent=23 // pred_region
        %p147 = scmp.lt.s32.totalorder %s16, 1
        %s148 = scalar_select %p147, %s16, 1
        %p149 = scmp.lt.s32.totalorder %s17, 0
        %s150 = scalar_select %p149, %s17, 0
        %s151 = smul.addr %s150, 3
        %s152 = smul.addr %s148, 3
        %s153 = sadd.s32 %s151, %s152
        %s154 = smul.addr %s153, 2
        %s155 = scalar_lea.vmem %s0, %s154
      $region28: #{conv_same_2d.1} parent=23 // pred_fallthru
        _
    $region24: #{conv_same_2d.1} parent=5 // pred_fallthru
      _
    %p156 = scmp.le.s32.totalorder 1, %s9
    %p157 = scmp.lt.s32.totalorder %s9, 3
    %p158 = pnand %p156, %p157
    %p159 = pneg %p158
    // Predicated region
    $region29: #{conv_same_2d.1} parent=5 // pred_check
      _
    $region30: #{conv_same_2d.1} parent=5 // pred_check_branch
      %161 = sbr.rel (%p158) target = $region32
    $region31: #{conv_same_2d.1} parent=5 // pred_region
      %s162 = ssub.s32 %s9, 1
      %p163 = scmp.lt.s32.totalorder %s18, 1
      %s164 = scalar_select %p163, %s18, 1
      %p165 = scmp.lt.s32.totalorder %s19, 0
      %s166 = scalar_select %p165, %s19, 0
      %s167 = smul.addr %s166, 3
      %s168 = smul.addr %s164, 3
      %s169 = sadd.s32 %s167, %s168
      %s170 = smul.addr %s169, 2
      %s171 = scalar_lea.vmem %s0, %s170
      %p172 = pneg %p49
      %p173 = pneg %p46
      %p174 = pneg %p70
      %p175 = pneg %p67
      %p176 = pneg %p91
      %p177 = pneg %p88
      %p178 = pneg %p119
      %p179 = pneg %p116
      %s180 = smul.u32 2, %s19
      %p181 = scmp.lt.s32.totalorder %s18, 1
      %s182 = scalar_select %p181, %s18, 1
      %p183 = scmp.lt.s32.totalorder %s180, 1
      %s184 = scalar_select %p183, %s180, 1
      %s185 = smul.addr %s182, 2
      %s186 = sadd.s32 %s184, %s185
      %s187 = smul.addr %s186, 8
      %s188 = scalar_lea.vmem %s3, %s187
      %p189 = scmp.lt.s32.totalorder %s18, 1
      %s190 = scalar_select %p189, %s18, 1
      %p191 = scmp.lt.s32.totalorder %s19, 0
      %s192 = scalar_select %p191, %s19, 0
      %s193 = smul.addr %s192, 3
      %s194 = smul.addr %s190, 3
      %s195 = sadd.s32 %s193, %s194
      %s196 = smul.addr %s195, 2
      %s197 = scalar_lea.vmem %s0, %s196
      %s198 = smul.u32 2, %s19
      %p199 = scmp.lt.s32.totalorder %s18, 1
      %s200 = scalar_select %p199, %s18, 1
      %p201 = scmp.lt.s32.totalorder %s198, 1
      %s202 = scalar_select %p201, %s198, 1
      %s203 = smul.addr %s200, 2
      %s204 = sadd.s32 %s202, %s203
      %s205 = smul.addr %s204, 8
      %s206 = scalar_lea.vmem %s3, %s205
      %s207 = smul.u32 2, %s19
      %v209 = vld [vmem:[%s197] sm:$0x3f]
      %v211 = vcombine.high %v209, %v209
      %v213 = vunpack.c.l.s4 1983009808
      %v214 = vunpack.c.0.s8 %v213
      %v215 = vlaneseq
      %v216 = vshrl.u32 %v215, 7
      %v217 = vsub.s32 %v214, %v216
      %v218 = vrot.slane %v209, %v217
      %v220 = vunpack.c.l.s4 1983009808
      %v221 = vunpack.c.0.s8 %v220
      %v222 = vlaneseq
      %v223 = vshrl.u32 %v222, 7
      %v224 = vsub.s32 %v221, %v223
      %v225 = vrot.slane %v211, %v224
      %v226 = vcombine.high %v218, %v218
      %v227 = vcombine.low %v209, %v209
      %v229 = vunpack.c.l.s4 1983009808
      %v230 = vunpack.c.0.s8 %v229
      %v231 = vlaneseq
      %v232 = vshrl.u32 %v231, 7
      %v233 = vsub.s32 %v230, %v232
      %v234 = vrot.slane %v227, %v233
      %v235 = vcombine.high %v234, %v234
      %236 = vrot.lane.b32.xlu0 %v234, 127
      %v237 = vpop.permute.xlu0 %236
      %238 = vrot.lane.b32.xlu0 %v235, 127
      %v239 = vpop.permute.xlu0 %238
      %240 = vrot.lane.b32.xlu0 %v218, 127
      %v241 = vpop.permute.xlu0 %240
      %vm242 = vcmask 1039360
      %v243 = vsel %vm242, %v237, %v239
      %v244 = vsel %vm242, %v239, %v241
      %v245 = vcombine.low %v218, %v218
      %v246 = vcombine.low %v225, %v225
      %247 = vrot.lane.b32.xlu0 %v245, 126
      %v248 = vpop.permute.xlu0 %247
      %249 = vrot.lane.b32.xlu0 %v218, 126
      %v250 = vpop.permute.xlu0 %249
      %251 = vrot.lane.b32.xlu0 %v246, 126
      %v252 = vpop.permute.xlu0 %251
      %vm253 = vcmask 1031168
      %v254 = vsel %vm253, %v248, %v250
      %v255 = vsel %vm253, %v250, %v252
      %v256 = vcombine.low %v234, %v234
      %257 = vrot.lane.b32.xlu0 %v256, 110
      %v258 = vpop.permute.xlu0 %257
      %259 = vrot.lane.b32.xlu0 %v234, 110
      %v260 = vpop.permute.xlu0 %259
      %261 = vrot.lane.b32.xlu0 %v245, 110
      %v262 = vpop.permute.xlu0 %261
      %vm263 = vcmask 900096
      %v264 = vsel %vm263, %v258, %v260
      %v265 = vsel %vm263, %v260, %v262
      %266 = vrot.lane.b32.xlu0 %v218, 109
      %v267 = vpop.permute.xlu0 %266
      %268 = vrot.lane.b32.xlu0 %v226, 109
      %v269 = vpop.permute.xlu0 %268
      %270 = vrot.lane.b32.xlu0 %v225, 109
      %v271 = vpop.permute.xlu0 %270
      %vm272 = vcmask 891904
      %v273 = vsel %vm272, %v267, %v269
      %v274 = vsel %vm272, %v269, %v271
      %275 = vrot.lane.b32.xlu0 %v234, 108
      %v276 = vpop.permute.xlu0 %275
      %277 = vrot.lane.b32.xlu0 %v235, 108
      %v278 = vpop.permute.xlu0 %277
      %279 = vrot.lane.b32.xlu0 %v218, 108
      %v280 = vpop.permute.xlu0 %279
      %vm281 = vcmask 883712
      %v282 = vsel %vm281, %v276, %v278
      %v283 = vsel %vm281, %v278, %v280
      %284 = vrot.lane.b32.xlu0 %v245, 92
      %v285 = vpop.permute.xlu0 %284
      %286 = vrot.lane.b32.xlu0 %v218, 92
      %v287 = vpop.permute.xlu0 %286
      %288 = vrot.lane.b32.xlu0 %v246, 92
      %v289 = vpop.permute.xlu0 %288
      %vm290 = vcmask 752640
      %v291 = vsel %vm290, %v285, %v287
      %v292 = vsel %vm290, %v287, %v289
      %293 = vrot.lane.b32.xlu0 %v256, 91
      %v294 = vpop.permute.xlu0 %293
      %295 = vrot.lane.b32.xlu0 %v234, 91
      %v296 = vpop.permute.xlu0 %295
      %297 = vrot.lane.b32.xlu0 %v245, 91
      %v298 = vpop.permute.xlu0 %297
      %vm299 = vcmask 744448
      %v300 = vsel %vm299, %v294, %v296
      %v301 = vsel %vm299, %v296, %v298
      %302 = vrot.lane.b32.xlu0 %v218, 90
      %v303 = vpop.permute.xlu0 %302
      %304 = vrot.lane.b32.xlu0 %v226, 90
      %v305 = vpop.permute.xlu0 %304
      %306 = vrot.lane.b32.xlu0 %v225, 90
      %v307 = vpop.permute.xlu0 %306
      %vm308 = vcmask 736256
      %v309 = vsel %vm308, %v303, %v305
      %v310 = vsel %vm308, %v305, %v307
      %vm311 = vcmask 1041408
      %v314 = vsel %vm311, %v218, %v243
      %v317 = vsel %vm311, %v226, %v244
      %v320 = vsel %vm311, %v225, %v241
      %vm321 = vcmask 1043456
      %v323 = vsel %vm321, %v314, %v254
      %v325 = vsel %vm321, %v317, %v255
      %v327 = vsel %vm321, %v320, %v252
      %vm328 = vcmask 1045504
      %v330 = vsel %vm328, %v323, %v264
      %v333 = vsel %vm328, %v325, %v265
      %v336 = vsel %vm328, %v327, %v262
      %v340 = vsel %vm311, %v273, %v282
      %v343 = vsel %vm311, %v274, %v283
      %v346 = vsel %vm311, %v271, %v280
      %v348 = vsel %vm321, %v340, %v291
      %v350 = vsel %vm321, %v343, %v292
      %v352 = vsel %vm321, %v346, %v289
      %v354 = vsel %vm328, %v348, %v300
      %v357 = vsel %vm328, %v350, %v301
      %v360 = vsel %vm328, %v352, %v298
      %v362 = vld [vmem:[%s1] sm:$0xf]
      %v363 = vld [vmem:[%s2] sm:$0xff]
      %365 = vset.pattern.permute.xlu0 0
      %366 = vperm.xlu0 %365, %v363
      %v367 = vpop.permute.xlu0 %366
      %vm369 = vcmask 293888
      %v371 = vsel %vm369, %v362, 0
      %v374 = vsel %vm311, %v309, 0
      %v377 = vsel %vm311, %v310, 0
      %v380 = vsel %vm311, %v307, 0
      %382 = vmatprep.subr.bf16.mxu0 %v333
      %383 = vmatpush1.bf16.msra.mxu0 %v330
      %384 = vmatprep.subr.bf16.mxu0 %v357
      %385 = vmatpush1.bf16.msra.mxu0 %v354
      %386 = vmatprep.subr.bf16.mxu0 %v377
      %387 = vmatpush1.bf16.msra.mxu0 %v374
      %388 = vmatprep.subr.bf16.mxu0 0
      %389 = vmatpush1.bf16.msra.mxu0 0
      %390 = vmatprep.subr.bf16.mxu0 0
      %391 = vmatpush1.bf16.msra.mxu0 0
      %392 = vmatprep.subr.bf16.mxu0 0
      %393 = vmatpush1.bf16.msra.mxu0 0
      %394 = vmatprep.subr.bf16.mxu0 0
      %395 = vmatpush1.bf16.msra.mxu0 0
      %396 = vmatprep.subr.bf16.mxu0 0
      %397 = vmatpush1.bf16.msra.mxu0 0
      %398 = vmatprep.subr.bf16.mxu0 0
      %399 = vmatpush1.bf16.msra.mxu0 0
      %400 = vmatprep.subr.bf16.mxu0 0
      %401 = vmatpush1.bf16.msra.mxu0 0
      %402 = vmatprep.subr.bf16.mxu0 0
      %403 = vmatpush1.bf16.msra.mxu0 0
      %404 = vmatprep.subr.bf16.mxu0 0
      %405 = vmatpush1.bf16.msra.mxu0 0
      %406 = vmatprep.subr.bf16.mxu0 0
      %407 = vmatpush1.bf16.msra.mxu0 0
      %408 = vmatprep.subr.bf16.mxu0 0
      %409 = vmatpush1.bf16.msra.mxu0 0
      %410 = vmatprep.subr.bf16.mxu0 0
      %411 = vmatpush1.bf16.msra.mxu0 0
      %412 = vmatprep.subr.bf16.mxu0 0
      %413 = vmatpush1.bf16.msra.mxu0 0
      %414 = vmatprep.mubr.bf16.mxu0 0
      %415 = vmatmul.mubr.bf16.gmra.mrb[0].mxu0 %v371
      %v416 = vpop.f32.mrb[0].mxu0
      %v417 = vadd.f32 %v367, %v416
      %v418 = vpop.f32.mrb[0].mxu0
      %v419 = vadd.f32 %v367, %v418
      %v420 = vpop.f32.mrb[0].mxu0
      %v421 = vpop.f32.mrb[0].mxu0
      %422 = vdwg.mxu0
      %423 = vmatprep.subr.bf16.mxu0 0
      %424 = vmatpush1.bf16.msra.mxu0 %v336
      %425 = vmatprep.subr.bf16.mxu0 0
      %426 = vmatpush1.bf16.msra.mxu0 %v360
      %427 = vmatprep.subr.bf16.mxu0 0
      %428 = vmatpush1.bf16.msra.mxu0 %v380
      %429 = vmatprep.subr.bf16.mxu0 0
      %430 = vmatpush1.bf16.msra.mxu0 0
      %431 = vmatprep.subr.bf16.mxu0 0
      %432 = vmatpush1.bf16.msra.mxu0 0
      %433 = vmatprep.subr.bf16.mxu0 0
      %434 = vmatpush1.bf16.msra.mxu0 0
      %435 = vmatprep.subr.bf16.mxu0 0
      %436 = vmatpush1.bf16.msra.mxu0 0
      %437 = vmatprep.subr.bf16.mxu0 0
      %438 = vmatpush1.bf16.msra.mxu0 0
      %439 = vmatprep.subr.bf16.mxu0 0
      %440 = vmatpush1.bf16.msra.mxu0 0
      %441 = vmatprep.subr.bf16.mxu0 0
      %442 = vmatpush1.bf16.msra.mxu0 0
      %443 = vmatprep.subr.bf16.mxu0 0
      %444 = vmatpush1.bf16.msra.mxu0 0
      %445 = vmatprep.subr.bf16.mxu0 0
      %446 = vmatpush1.bf16.msra.mxu0 0
      %447 = vmatprep.subr.bf16.mxu0 0
      %448 = vmatpush1.bf16.msra.mxu0 0
      %449 = vmatprep.subr.bf16.mxu0 0
      %450 = vmatpush1.bf16.msra.mxu0 0
      %451 = vmatprep.subr.bf16.mxu0 0
      %452 = vmatpush1.bf16.msra.mxu0 0
      %453 = vmatprep.subr.bf16.mxu0 0
      %454 = vmatpush1.bf16.msra.mxu0 0
      %455 = vmatprep.mubr.bf16.mxu0 0
      %456 = vmatmul.mubr.bf16.gmra.mrb[0].mxu0 %v371
      %v457 = vpop.f32.mrb[0].mxu0
      %v458 = vadd.f32 %v367, %v457
      %v459 = vpop.f32.mrb[0].mxu0
      %v460 = vpop.f32.mrb[0].mxu0
      %v461 = vpop.f32.mrb[0].mxu0
      %462 = vdwg.mxu0
      %vm463 = vcmask 130048
      %464 = vst.msk [vmem:[%s206] sm:$0xff] %vm463, %v417
      %466 = vrot.lane.b32.xlu0 %v417, 126
      %v467 = vpop.permute.xlu0 %466
      %vm469 = vcmask 261248
      %470 = vst.msk [vmem:[%s206] sm:$0xff] %vm469, %v467
      %471 = vrot.lane.b32.xlu0 %v417, 124
      %v472 = vpop.permute.xlu0 %471
      %vm474 = vcmask 392448
      %475 = vst.msk [vmem:[%s206] sm:$0xff] %vm474, %v472
      %476 = vrot.lane.b32.xlu0 %v417, 122
      %v477 = vpop.permute.xlu0 %476
      %vm479 = vcmask 523648
      %480 = vst.msk [vmem:[%s206] sm:$0xff] %vm479, %v477
      %481 = vrot.lane.b32.xlu0 %v417, 120
      %v482 = vpop.permute.xlu0 %481
      %vm484 = vcmask 654848
      %485 = vst.msk [vmem:[%s206] sm:$0xff] %vm484, %v482
      %486 = vrot.lane.b32.xlu0 %v417, 118
      %v487 = vpop.permute.xlu0 %486
      %vm489 = vcmask 786048
      %490 = vst.msk [vmem:[%s206] sm:$0xff] %vm489, %v487
      %491 = vrot.lane.b32.xlu0 %v417, 116
      %v492 = vpop.permute.xlu0 %491
      %vm494 = vcmask 917248
      %495 = vst.msk [vmem:[%s206] sm:$0xff] %vm494, %v492
      %497 = vrot.lane.b32.xlu0 %v417, 114
      %v498 = vpop.permute.xlu0 %497
      %499 = vrot.lane.b32.xlu0 %v419, 114
      %v500 = vpop.permute.xlu0 %499
      %vm501 = vcmask 932864
      %v502 = vsel %vm501, %v498, %v500
      %vm504 = vcmask 1048448
      %505 = vst.msk [vmem:[%s206] sm:$0xff] %vm504, %v502
      %506 = vrot.lane.b32.xlu0 %v419, 112
      %v507 = vpop.permute.xlu0 %506
      %509 = vst.msk [vmem:[%s206 + $0x8] sm:$0xff] %vm463, %v507
      %510 = vrot.lane.b32.xlu0 %v419, 110
      %v511 = vpop.permute.xlu0 %510
      %513 = vst.msk [vmem:[%s206 + $0x8] sm:$0xff] %vm469, %v511
      %514 = vrot.lane.b32.xlu0 %v419, 108
      %v515 = vpop.permute.xlu0 %514
      %517 = vst.msk [vmem:[%s206 + $0x8] sm:$0xff] %vm474, %v515
      %518 = vrot.lane.b32.xlu0 %v419, 106
      %v519 = vpop.permute.xlu0 %518
      %521 = vst.msk [vmem:[%s206 + $0x8] sm:$0xff] %vm479, %v519
      %522 = vrot.lane.b32.xlu0 %v419, 104
      %v523 = vpop.permute.xlu0 %522
      %525 = vst.msk [vmem:[%s206 + $0x8] sm:$0xff] %vm484, %v523
      %526 = vrot.lane.b32.xlu0 %v419, 102
      %v527 = vpop.permute.xlu0 %526
      %529 = vst.msk [vmem:[%s206 + $0x8] sm:$0xff] %vm489, %v527
      %531 = vrot.lane.b32.xlu0 %v419, 100
      %v532 = vpop.permute.xlu0 %531
      %533 = vrot.lane.b32.xlu0 %v458, 100
      %v534 = vpop.permute.xlu0 %533
      %vm535 = vcmask 818176
      %v536 = vsel %vm535, %v532, %v534
      %538 = vst.msk [vmem:[%s206 + $0x8] sm:$0xff] %vm494, %v536
      %539 = vrot.lane.b32.xlu0 %v458, 98
      %v540 = vpop.permute.xlu0 %539
      %542 = vst.msk [vmem:[%s206 + $0x8] sm:$0xff] %vm504, %v540
      %s543 = smul.u32 2, %s19
      %p544 = scmp.lt.s32.totalorder %s18, 1
      %s545 = scalar_select %p544, %s18, 1
      %p546 = scmp.lt.s32.totalorder %s543, 1
      %s547 = scalar_select %p546, %s543, 1
      %s548 = smul.addr %s545, 2
      %s549 = sadd.s32 %s547, %s548
      %s550 = smul.addr %s549, 8
      %s551 = scalar_lea.vmem %s3, %s550
      // Predicated region
      $region33: #{conv_same_2d.1} parent=31 // pred_check
        %p552 = pneg %p116
      $region34: #{conv_same_2d.1} parent=31 // pred_check_branch
        %554 = sbr.rel (%p552) target = $region36
      $region35: #{conv_same_2d.1} parent=31 // pred_region
        %s555 = smul.u32 2, %s19
      $region36: #{conv_same_2d.1} parent=31 // pred_fallthru
        _
    $region32: #{conv_same_2d.1} parent=5 // pred_fallthru
      _
    %p556 = scmp.le.s32.totalorder 2, %s9
    // Predicated region
    $region37: #{conv_same_2d.1} parent=5 // pred_check
      %p557 = pneg %p556
    $region38: #{conv_same_2d.1} parent=5 // pred_check_branch
      %559 = sbr.rel (%p557) target = $region40
    $region39: #{conv_same_2d.1} parent=5 // pred_region
      %s560 = ssub.s32 %s9, 2
      // Predicated region
      $region41: #{conv_same_2d.1} parent=39 // pred_check
        %p561 = pneg %p122
      $region42: #{conv_same_2d.1} parent=39 // pred_check_branch
        %563 = sbr.rel (%p561) target = $region44
      $region43: #{conv_same_2d.1} parent=39 // pred_region
        %s564 = smul.u32 2, %s21
        %p565 = scmp.lt.s32.totalorder %s20, 1
        %s566 = scalar_select %p565, %s20, 1
        %p567 = scmp.lt.s32.totalorder %s564, 1
        %s568 = scalar_select %p567, %s564, 1
        %s569 = smul.addr %s566, 2
        %s570 = sadd.s32 %s568, %s569
        %s571 = smul.addr %s570, 8
        %s572 = scalar_lea.vmem %s3, %s571
      $region44: #{conv_same_2d.1} parent=39 // pred_fallthru
        _
    $region40: #{conv_same_2d.1} parent=5 // pred_fallthru
      _
  $region6: #{conv_same_2d.1} parent=0 // loop_footer
    %s13 = sadd.s32 1, %s9
  $region7: #{conv_same_2d.1} parent=0 // loop_footer_branch
    %8 = sbr.rel target = $region3
  $region8: #{conv_same_2d.1} parent=0 // loop_exit
    _

</llo_original>
